<compile_context>
chip_gen: v7x
topology: tpu7x:2x2x1
jax: 0.10.0
libtpu: 0.0.40
codegen_flags: <defaults>
</compile_context>

<pallas_src>
import functools

import jax
import jax.numpy as jnp
from jax.experimental import pallas as pl
from jax.experimental.pallas import tpu as pltpu

EPSILON = 1e-6


def _rmsnorm_noscale_kernel(x_ref, o_ref, *, eps):
    # x_ref / o_ref: (block_rows, hidden) tile resident in VMEM.
    x = x_ref[...].astype(jnp.float32)
    # mean of squares along the hidden (lane) axis -> XLU; rsqrt -> EUP.
    var = jnp.mean(x * x, axis=-1, keepdims=True)
    inv = jax.lax.rsqrt(var + eps)
    o_ref[...] = (x * inv).astype(o_ref.dtype)


def _vmem_capacity_bytes():
    try:
        info = pltpu.get_tpu_info()
        cap = getattr(info, "vmem_capacity_bytes", None)
        if cap:
            return int(cap)
    except Exception:
        pass
    # Conservative fallback (v7x has 64 MiB per TensorCore).
    return 64 << 20


def _choose_block_rows(rows, hidden, dtype):
    itemsize = jnp.dtype(dtype).itemsize
    # Sublane multiple per dtype packing: 8 for f32, 16 for bf16, 32 for int8/fp8.
    sublane = max(8, 32 // max(1, itemsize))

    # Target ~4 MiB per input block.
    target_bytes = 4 << 20
    block_rows = max(sublane, target_bytes // max(1, hidden * itemsize))
    block_rows = max(sublane, (block_rows // sublane) * sublane)

    # Cap against VMEM: 2 input bufs + 2 output bufs + f32 intermediate,
    # with ~25% headroom, so double-buffering stays alive (esp. v7x 64 MiB).
    budget = int(_vmem_capacity_bytes() * 0.75)
    per_row_bytes = hidden * (2 * itemsize + 2 * itemsize + 4)
    max_rows = max(sublane, (budget // max(1, per_row_bytes)) // sublane * sublane)
    block_rows = min(block_rows, max_rows)

    # Keep at least ~4 grid steps on large problems so the "parallel" row
    # axis can be sharded across TensorCores (v7x megacore).
    min_steps = 4
    if rows > min_steps * sublane:
        cap = max(sublane, (rows // min_steps) // sublane * sublane)
        block_rows = min(block_rows, cap)

    # Small problem: take the whole row extent (a full-dim block is always a
    # legal block shape, no (8,128) divisibility requirement).
    if block_rows >= rows:
        block_rows = rows

    return block_rows, itemsize


def rmsnorm_noscale(x, *, epsilon=EPSILON, block_rows=None):
    """RMS-norm without scale over the last axis of `x` (any leading dims)."""
    orig_shape = x.shape
    hidden = orig_shape[-1]
    rows = 1
    for d in orig_shape[:-1]:
        rows *= d
    x2d = x.reshape(rows, hidden)

    if block_rows is None:
        block_rows, itemsize = _choose_block_rows(rows, hidden, x.dtype)
    else:
        block_rows = max(1, min(block_rows, rows))
        itemsize = jnp.dtype(x.dtype).itemsize

    # No padding: partial last block is handled by Pallas (per-row compute,
    # reduction only along hidden; out-of-range rows are never written back).
    grid = (pl.cdiv(rows, block_rows),)

    # Explicit VMEM budget: 2 bufs x (in + out) x block bytes + headroom,
    # clamped to physical capacity.
    block_bytes = block_rows * hidden * itemsize
    vmem_limit = int(4 * block_bytes * 1.5) + (2 << 20)
    vmem_limit = max(8 << 20, min(vmem_limit, _vmem_capacity_bytes()))

    out = pl.pallas_call(
        functools.partial(_rmsnorm_noscale_kernel, eps=epsilon),
        out_shape=jax.ShapeDtypeStruct((rows, hidden), x.dtype),
        grid_spec=pltpu.PrefetchScalarGridSpec(
            num_scalar_prefetch=0,
            grid=grid,
            in_specs=[pl.BlockSpec((block_rows, hidden), lambda i: (i, 0))],
            out_specs=pl.BlockSpec((block_rows, hidden), lambda i: (i, 0)),
        ),
        compiler_params=pltpu.CompilerParams(
            dimension_semantics=("parallel",),
            vmem_limit_bytes=vmem_limit,
        ),
    )(x2d)

    return out.reshape(orig_shape)


def _reference(x, epsilon=EPSILON):
    xf = x.astype(jnp.float32)
    var = jnp.mean(xf * xf, axis=-1, keepdims=True)
    return (xf * jax.lax.rsqrt(var + epsilon)).astype(x.dtype)


if __name__ == "__main__":
    key = jax.random.PRNGKey(0)
    # (batch=2, seq=8, hidden=32), normalized over hidden (dim=-1)
    x = jax.random.normal(key, (2, 8, 32), dtype=jnp.float32)

    y = rmsnorm_noscale(x)
    y = jax.block_until_ready(y)

    y_ref = _reference(x)
    assert y.shape == x.shape and y.dtype == x.dtype
    assert jnp.allclose(y, y_ref, atol=1e-5, rtol=1e-5)

    print("KERNEL_OK")
</pallas_src>

<mosaic_0001>
module attributes {stable_mosaic.version = 11 : i64} {
  func.func @_rmsnorm_noscale_kernel(%arg0: i32, %arg1: memref<16x32xf32, #tpu.memory_space<vmem>>, %arg2: memref<16x32xf32, #tpu.memory_space<vmem>>) attributes {dimension_semantics = [#tpu.dimension_semantics<parallel>], iteration_bounds = array<i64: 1>, scalar_prefetch = 0 : i64, scratch_operands = 0 : i64, tpu.core_type = #tpu.core_type<tc>, window_params = [{transform_indices = @transform_0, window_bounds = array<i64: 16, 32>}, {transform_indices = @transform_1, window_bounds = array<i64: 16, 32>}]} {
    %c0 = arith.constant 0 : index
    %c0_0 = arith.constant 0 : index
    %0 = vector.load %arg1[%c0, %c0_0] : memref<16x32xf32, #tpu.memory_space<vmem>>, vector<16x32xf32>
    %1 = arith.mulf %0, %0 : vector<16x32xf32>
    %cst = arith.constant dense<0.000000e+00> : vector<16xf32>
    %2 = vector.multi_reduction <add>, %1, %cst [1] : vector<16x32xf32> to vector<16xf32>
    %3 = vector.shape_cast %2 : vector<16xf32> to vector<16x1xf32>
    %cst_1 = arith.constant 3.200000e+01 : f32
    %4 = vector.broadcast %cst_1 : f32 to vector<16x1xf32>
    %5 = arith.divf %3, %4 : vector<16x1xf32>
    %cst_2 = arith.constant 9.99999997E-7 : f32
    %6 = vector.broadcast %cst_2 : f32 to vector<16x1xf32>
    %7 = arith.addf %5, %6 : vector<16x1xf32>
    %8 = math.rsqrt %7 : vector<16x1xf32>
    %9 = vector.broadcast %8 : vector<16x1xf32> to vector<16x32xf32>
    %10 = arith.mulf %0, %9 : vector<16x32xf32>
    %c0_3 = arith.constant 0 : index
    %c0_4 = arith.constant 0 : index
    %11 = vector.load %arg2[%c0_3, %c0_4] : memref<16x32xf32, #tpu.memory_space<vmem>>, vector<16x32xf32>
    tpu.vector_store %arg2[%c0_3, %c0_4], %10 {strides = array<i32>} : memref<16x32xf32, #tpu.memory_space<vmem>>, vector<16x32xf32>,
    return
  }
  func.func @transform_0(%arg0: i32) -> (i32, i32) {
    %c0_i32 = arith.constant 0 : i32
    %c0_i32_0 = arith.constant 0 : i32
    return %arg0, %c0_i32 : i32, i32
  }
  func.func @transform_1(%arg0: i32) -> (i32, i32) {
    %c0_i32 = arith.constant 0 : i32
    %c0_i32_0 = arith.constant 0 : i32
    return %arg0, %c0_i32 : i32, i32
  }
}

</mosaic_0001>

<llo_original>
// kernel: tpu_custom_call.1
$region0: #{tpu_custom_call.1}
  #allocation0 [shape = 'u32[]', space=smem, size = 0x4, offset = 0x4, fixed_abs, tag = 'smem constant byte address 0x4 - core index']
  #allocation1 [shape = 'u32[144,128]{1,0:T(1,128)}', space=vmem, size = 0x12000, scoped, tag = 'internal scratch']
  %s0 = inlined_call_operand.hbm [shape: f32[16,32], index: 0, kind: input, shape index: {}]
  %s1 = inlined_call_operand.hbm [shape: f32[16,32], index: 1, kind: output, shape index: {}]
  %s2 = sld [smem:[#allocation0]]
  $region18: #{tpu_custom_call.1} parent=0
    _
  %s4 = ssub.s32 1, %s2
  %s5 = scalar_select 0, %s4, %s2
  $region1: #{tpu_custom_call.1} parent=0
    #allocation2 [shape = 'u8[8192]{0}', space=vmem, size = 0x2000, scoped, tag = 'input window, operand 0, single buffered']
    #allocation3 [shape = 's32[1]{0}', space=sflag, size = 0x4, scoped, tag = 'scoped memory for tpu_custom_call.1']
    #allocation4 [shape = 's32[1]{0}', space=sflag, size = 0x4, scoped, tag = 'scoped memory for tpu_custom_call.1']
    #allocation5 [shape = 'u8[8192]{0}', space=vmem, size = 0x2000, scoped, tag = 'output window, operand 0, single buffered']
    %6 = vsyncpa [#allocation3], 0
    %7 = vsyncpa [#allocation4], 0
    // Predicated region
    $region2: #{tpu_custom_call.1} parent=1 // pred_check
      _
    $region3: #{tpu_custom_call.1} parent=1 // pred_check_branch
      %9 = sbr.rel (0) target = $region5
    $region4: #{tpu_custom_call.1} parent=1 // pred_region
      %s11 = ssub.s32 256, 256
      %12 = vsyncadd [#allocation3], %s11
      %s13 = sshll.u32 [#allocation2], 4
      %s14 = int_to_ptr.vmem [resolvable:$true] %s13
      %19 = dma.hbm_to_vmem [thread:$0]  %s0, 256, %s14, [#allocation3], 128, 128, 8
    $region5: #{tpu_custom_call.1} parent=1 // pred_fallthru
      _
    // Predicated region
    $region6: #{tpu_custom_call.1} parent=1 // pred_check
      _
    $region7: #{tpu_custom_call.1} parent=1 // pred_check_branch
      %21 = sbr.rel (0) target = $region9
    $region8: #{tpu_custom_call.1} parent=1 // pred_region
      %22 = dma.done [#allocation3], 256
    $region9: #{tpu_custom_call.1} parent=1 // pred_fallthru
      _
    %v23 = vld [vmem:[#allocation2] sm:$0xff]
    %v24 = vld [vmem:[#allocation2 + $0x8] sm:$0xff]
    %v25 = vmul.f32 %v23, %v23
    %v26 = vmul.f32 %v24, %v24
    %vm27 = vcmask 261120
    %v28 = vsel %vm27, %v25, 0.0
    %29 = vadd.xlane.f32.xlu0 %v28
    %v30 = vpop.xlane.xlu0 %29
    %v31 = vsel %vm27, %v26, 0.0
    %32 = vadd.xlane.f32.xlu0 %v31
    %v33 = vpop.xlane.xlu0 %32
    %v34 = vrcp.pop 32.0
    %v35 = vmul.f32 %v30, %v34
    %v36 = vmul.f32 %v33, %v34
    %v37 = vadd.f32 %v35, 1e-06
    %v38 = vadd.f32 %v36, 1e-06
    %v39 = vrsqrt.pop %v37
    %v40 = vrsqrt.pop %v38
    %v41 = vmul.f32 %v23, %v39
    %v42 = vmul.f32 %v24, %v40
    %43 = vst.msk [vmem:[#allocation5] sm:$0xff] %vm27, %v41
    %44 = vst.msk [vmem:[#allocation5 + $0x8] sm:$0xff] %vm27, %v42
    // Predicated region
    $region10: #{tpu_custom_call.1} parent=1 // pred_check
      _
    $region11: #{tpu_custom_call.1} parent=1 // pred_check_branch
      %46 = sbr.rel (0) target = $region13
    $region12: #{tpu_custom_call.1} parent=1 // pred_region
      %s48 = ssub.s32 256, 256
      %49 = vsyncadd [#allocation4], %s48
      %s50 = sshll.u32 [#allocation5], 4
      %s51 = int_to_ptr.vmem [resolvable:$true] %s50
      %56 = dma.vmem_to_hbm [thread:$0]  %s51, 256, %s1, [#allocation4], 128, 128, 8
    $region13: #{tpu_custom_call.1} parent=1 // pred_fallthru
      _
    // Predicated region
    $region14: #{tpu_custom_call.1} parent=1 // pred_check
      _
    $region15: #{tpu_custom_call.1} parent=1 // pred_check_branch
      %58 = sbr.rel (0) target = $region17
    $region16: #{tpu_custom_call.1} parent=1 // pred_region
      %59 = dma.done [#allocation4], 256
    $region17: #{tpu_custom_call.1} parent=1 // pred_fallthru
      _
    %60 = vsyncpa [#allocation3], 1
    %61 = vsyncpa [#allocation4], 1

</llo_original>
